<compile_context>
chip_gen: v6e
topology: v6e:2x2x1
jax: 0.10.0
libtpu: 0.0.40
codegen_flags: <defaults>
</compile_context>

<pallas_src>
import math

import jax
import jax.numpy as jnp
from jax import lax
from jax.experimental import pallas as pl
from jax.experimental.pallas import tpu as pltpu

# constants from the reference module (constant.GRID_H / constant.GRID_W)
GRID_H = 8
GRID_W = 8
MIN_H = 384.0 / GRID_H / 8.0
MIN_W = 512.0 / GRID_W / 8.0

LANE = 128


def _round_up(x, m):
    return ((x + m - 1) // m) * m


def _vmem_limit_bytes():
    cap = 64 * 1024 * 1024
    try:
        info = pltpu.get_tpu_info()
        cap = int(getattr(info, "vmem_capacity_bytes", cap))
    except Exception:
        pass
    # headroom on every generation (v7x: 64 MiB/TC, v5e/v6e: 128 MiB)
    return int(min(cap * 3 // 4, 100 * 1024 * 1024))


# --------------------------------------------------------------------------
# Pallas kernel: fused matmul + bias + ReLU (first VGG conv via im2col K=27)
# --------------------------------------------------------------------------
def _matmul_bias_relu(x2d, w2d, b2d, out_dtype=jnp.bfloat16):
    M, K = x2d.shape
    Cout = w2d.shape[1]
    tm = 512 if M >= 512 else _round_up(M, 8)
    Mp = _round_up(M, tm)
    xp = jnp.pad(x2d, ((0, Mp - M), (0, 0)))

    def kernel(x_ref, w_ref, b_ref, o_ref):
        y = jnp.dot(x_ref[...], w_ref[...], preferred_element_type=jnp.float32)
        o_ref[...] = jnp.maximum(y + b_ref[...], 0.0).astype(o_ref.dtype)

    out = pl.pallas_call(
        kernel,
        out_shape=jax.ShapeDtypeStruct((Mp, Cout), out_dtype),
        grid=(Mp // tm,),
        in_specs=[pl.BlockSpec((tm, K), lambda i: (i, 0)),
                  pl.BlockSpec((K, Cout), lambda i: (0, 0)),
                  pl.BlockSpec((1, Cout), lambda i: (0, 0))],
        out_specs=pl.BlockSpec((tm, Cout), lambda i: (i, 0)),
        compiler_params=pltpu.CompilerParams(
            dimension_semantics=("parallel",),
            vmem_limit_bytes=_vmem_limit_bytes()),
    )(xp, w2d, b2d)
    return out[:M]


def conv3x3_relu_small_cin(x, w, b):
    """First VGG conv (Cin=3): fold the 9 taps into K (27 -> pad 32)."""
    N, H, W, Cin = x.shape
    Cout = w.shape[-1]
    xp = jnp.pad(x, ((0, 0), (1, 1), (1, 1), (0, 0)))
    cols = [xp[:, dh:dh + H, dw:dw + W, :] for dh in range(3) for dw in range(3)]
    patches = jnp.concatenate(cols, axis=-1)                     # (N,H,W,9*Cin)
    K = 9 * Cin
    Kp = _round_up(K, 8)
    patches = jnp.pad(patches, ((0, 0), (0, 0), (0, 0), (0, Kp - K)))
    x2d = patches.reshape(N * H * W, Kp).astype(jnp.bfloat16)
    w2d = jnp.pad(w.reshape(K, Cout), ((0, Kp - K), (0, 0))).astype(jnp.bfloat16)
    b2d = b.reshape(1, Cout).astype(jnp.float32)
    out = _matmul_bias_relu(x2d, w2d, b2d)
    return out.reshape(N, H, W, Cout)


# --------------------------------------------------------------------------
# Pallas kernel: fused 3x3 conv + bias + ReLU (general VGG conv layers)
# --------------------------------------------------------------------------
def conv3x3_relu(x, w, b):
    """3x3 'same' conv + ReLU, NHWC, bf16 MXU matmuls with f32 accumulation.

    One grid step per image.  The zero-padded image is flattened with a row
    stride Wp = round_up(W+2, 8); each of the 9 taps is a (mostly aligned) row
    shift of the bf16 input slab followed by one MXU matmul with the
    VMEM-resident weight tap.  Bias + ReLU + pad-column crop happen in the
    epilogue (per-row stores), so there is no JAX-side crop pass.
    """
    # TODO(synk): spatial extents are assumed to fit VMEM per image (true for
    # these shapes); very large images would need an additional row-tiled path.
    N, H, W, Cin = x.shape
    Cout = w.shape[-1]
    Wp = _round_up(W + 2, 8)        # aligned row stride (6/9 tap shifts aligned)
    Mp = (H + 3) * Wp               # H+2 padded rows + 1 extra zero row (tap overrun)
    MR = H * Wp

    xp = jnp.pad(x.astype(jnp.bfloat16),
                 ((0, 0), (1, 2), (1, Wp - (W + 1)), (0, 0)))    # single pad pass
    xf = xp.reshape(N, Mp, Cin)
    w9 = w.reshape(9, Cin, Cout).astype(jnp.bfloat16)
    b2 = b.reshape(1, Cout).astype(jnp.float32)

    def kernel(x_ref, w_ref, b_ref, o_ref):
        xv = x_ref[...]                                          # (Mp, Cin) bf16
        acc = None
        for dh in range(3):
            for dw in range(3):
                off = dh * Wp + dw
                part = xv[off:off + MR, :]                       # slice the INPUT
                y = jnp.dot(part, w_ref[dh * 3 + dw],
                            preferred_element_type=jnp.float32)  # (MR, Cout)
                acc = y if acc is None else acc + y
        outb = jnp.maximum(acc + b_ref[...], 0.0).astype(o_ref.dtype)
        for h in range(H):                                       # drop pad columns
            o_ref[h] = outb[h * Wp:h * Wp + W, :]

    out = pl.pallas_call(
        kernel,
        out_shape=jax.ShapeDtypeStruct((N, H, W, Cout), jnp.bfloat16),
        grid=(N,),
        in_specs=[
            pl.BlockSpec((None, Mp, Cin), lambda n: (n, 0, 0)),
            pl.BlockSpec((9, Cin, Cout), lambda n: (0, 0, 0)),   # VMEM-resident
            pl.BlockSpec((1, Cout), lambda n: (0, 0)),
        ],
        out_specs=pl.BlockSpec((None, H, W, Cout), lambda n: (n, 0, 0, 0)),
        compiler_params=pltpu.CompilerParams(
            dimension_semantics=("parallel",),
            vmem_limit_bytes=_vmem_limit_bytes()),
    )(xf, w9, b2)
    return out


# --------------------------------------------------------------------------
# Pallas kernel: tiled full-tensor mean of squared difference (perceptual term)
# --------------------------------------------------------------------------
def _mean_sq_diff(a, b):
    assert a.shape == b.shape
    denom = float(a.size)
    total = int(a.size)
    r = pl.cdiv(total, LANE)
    tr = min(2048, _round_up(r, 8))            # ~1 MiB f32 blocks
    rp = _round_up(r, tr)

    def prep(t):
        tf = t.reshape(-1)
        tf = jnp.pad(tf, (0, rp * LANE - total))
        return tf.reshape(rp, LANE)

    a2, b2 = prep(a), prep(b)

    def kernel(a_ref, b_ref, o_ref, acc_ref):
        i = pl.program_id(0)

        @pl.when(i == 0)
        def _():
            acc_ref[0] = 0.0

        d = a_ref[...].astype(jnp.float32) - b_ref[...].astype(jnp.float32)
        acc_ref[0] += jnp.sum(d * d)

        @pl.when(i == pl.num_programs(0) - 1)
        def _():
            o_ref[0, 0] = acc_ref[0] * (1.0 / denom)

    out = pl.pallas_call(
        kernel,
        out_shape=jax.ShapeDtypeStruct((1, 1), jnp.float32),
        grid=(rp // tr,),
        in_specs=[pl.BlockSpec((tr, LANE), lambda i: (i, 0)),
                  pl.BlockSpec((tr, LANE), lambda i: (i, 0))],
        out_specs=pl.BlockSpec((1, 1), lambda i: (0, 0),
                               memory_space=pltpu.MemorySpace.SMEM),
        scratch_shapes=[pltpu.SMEM((1,), jnp.float32)],
        compiler_params=pltpu.CompilerParams(
            dimension_semantics=("arbitrary",)),
    )(a2, b2)
    return out[0, 0]


# --------------------------------------------------------------------------
# Pallas kernel: fused per-image-pair statistics (L1 / GradLoss / SSIM)
# --------------------------------------------------------------------------
_WIN = 11
_HALF = _WIN // 2
_g = [math.exp(-((i - _HALF) ** 2) / (2.0 * 1.5 ** 2)) for i in range(_WIN)]
GAUSS_1D = [v / sum(_g) for v in _g]   # outer product == reference 2D window


def _gauss_band_matrix(n):
    """(n,n) banded matrix implementing the zero-padded 'same' 11-tap blur."""
    g = jnp.asarray(GAUSS_1D, jnp.float32)
    r = jnp.arange(n)[:, None]
    c = jnp.arange(n)[None, :]
    d = c - r + _HALF
    valid = (d >= 0) & (d <= 2 * _HALF)
    return jnp.where(valid, g[jnp.clip(d, 0, 2 * _HALF)], 0.0)


def _pick_group(nc, h, w):
    """Largest channel-image batch per grid step (block <= ~2 MiB, rows % 8)."""
    for g in range(nc, 0, -1):
        if nc % g:
            continue
        rows = g * h
        if rows * w * 4 > 2 * 1024 * 1024:
            continue
        if g != nc and rows % 8:
            continue
        return g
    return 1


def _pair_stat_sums(img1, img2, with_ssim):
    """One fused HBM pass over an image pair.

    Returns (mean|a-b|, mean((lap(a)-lap(b))^2), mean(ssim_map)) — the last is
    0 when with_ssim=False.  Images are presented channel-stacked as
    (N*C*H, W) rows (one transpose per tensor); the zero-padded Laplacian is a
    shift-and-add stencil (pltpu.roll + boundary masks); the SSIM Gaussian blur
    is two small banded MXU matmuls fed straight from vregs.
    """
    N, H, W, C = img1.shape
    nc = N * C
    a2 = jnp.transpose(img1, (0, 3, 1, 2)).reshape(nc * H, W)
    b2 = jnp.transpose(img2, (0, 3, 1, 2)).reshape(nc * H, W)
    G = _pick_group(nc, H, W)
    RB = G * H
    nsteps = nc // G
    C1 = 0.01 ** 2
    C2 = 0.03 ** 2

    def body(x1, x2, gh, gw, acc_ref):
        d = x1 - x2
        acc_ref[0] += jnp.sum(jnp.abs(d))
        row = lax.broadcasted_iota(jnp.int32, (RB, W), 0)
        col = lax.broadcasted_iota(jnp.int32, (RB, W), 1)
        # zero-padded 3x3 Laplacian of d (lap(a)-lap(b) == lap(a-b))
        hm = jnp.where(row % H == 0, 0.0, pltpu.roll(d, 1, 0))
        hp = jnp.where(row % H == H - 1, 0.0, pltpu.roll(d, RB - 1, 0))
        wm = jnp.where(col == 0, 0.0, pltpu.roll(d, 1, 1))
        wp = jnp.where(col == W - 1, 0.0, pltpu.roll(d, W - 1, 1))
        lap = hm + hp + wm + wp - 4.0 * d
        acc_ref[1] += jnp.sum(lap * lap)
        if with_ssim:
            def blur(t):
                tw = jnp.dot(t, gw, preferred_element_type=jnp.float32)
                return jnp.dot(gh, tw, preferred_element_type=jnp.float32)
            mu1 = blur(x1)
            mu2 = blur(x2)
            s11 = blur(x1 * x1) - mu1 * mu1
            s22 = blur(x2 * x2) - mu2 * mu2
            s12 = blur(x1 * x2) - mu1 * mu2
            num = (2.0 * mu1 * mu2 + C1) * (2.0 * s12 + C2)
            den = (mu1 * mu1 + mu2 * mu2 + C1) * (s11 + s22 + C2)
            acc_ref[2] += jnp.sum(num / den)

    if with_ssim:
        def kernel(a_ref, b_ref, gh_ref, gw_ref, o_ref, acc_ref):
            i = pl.program_id(0)

            @pl.when(i == 0)
            def _():
                acc_ref[0] = 0.0
                acc_ref[1] = 0.0
                acc_ref[2] = 0.0

            body(a_ref[...], b_ref[...], gh_ref[...], gw_ref[...], acc_ref)

            @pl.when(i == pl.num_programs(0) - 1)
            def _():
                o_ref[0, 0] = acc_ref[0]
                o_ref[0, 1] = acc_ref[1]
                o_ref[0, 2] = acc_ref[2]

        # block-diagonal H-direction blur so G channel images share one matmul
        ghb = jnp.kron(jnp.eye(G, dtype=jnp.float32), _gauss_band_matrix(H))
        gw = _gauss_band_matrix(W)
        extra_inputs = (ghb, gw)
        extra_specs = [pl.BlockSpec((RB, RB), lambda i: (0, 0)),
                       pl.BlockSpec((W, W), lambda i: (0, 0))]
    else:
        def kernel(a_ref, b_ref, o_ref, acc_ref):
            i = pl.program_id(0)

            @pl.when(i == 0)
            def _():
                acc_ref[0] = 0.0
                acc_ref[1] = 0.0
                acc_ref[2] = 0.0

            body(a_ref[...], b_ref[...], None, None, acc_ref)

            @pl.when(i == pl.num_programs(0) - 1)
            def _():
                o_ref[0, 0] = acc_ref[0]
                o_ref[0, 1] = acc_ref[1]
                o_ref[0, 2] = acc_ref[2]

        extra_inputs = ()
        extra_specs = []

    out = pl.pallas_call(
        kernel,
        out_shape=jax.ShapeDtypeStruct((1, 3), jnp.float32),
        grid=(nsteps,),
        in_specs=[pl.BlockSpec((RB, W), lambda i: (i, 0)),
                  pl.BlockSpec((RB, W), lambda i: (i, 0))] + extra_specs,
        out_specs=pl.BlockSpec((1, 3), lambda i: (0, 0),
                               memory_space=pltpu.MemorySpace.SMEM),
        scratch_shapes=[pltpu.SMEM((3,), jnp.float32)],
        compiler_params=pltpu.CompilerParams(
            dimension_semantics=("arbitrary",)),
    )(a2, b2, *extra_inputs)
    # TODO(synk): on v7x a core-parallel partial-sum split would use both TCs.
    denom = float(N * C * H * W)
    return out[0, 0] / denom, out[0, 1] / denom, out[0, 2] / denom


def l1_and_grad_loss(img1, img2):
    s_l1, s_grad, _ = _pair_stat_sums(img1, img2, with_ssim=False)
    return s_l1, s_grad


def l1_ssim_grad_loss(img1, img2):
    return _pair_stat_sums(img1, img2, with_ssim=True)


# --------------------------------------------------------------------------
# VGG19 features[:23] (layer_indexs=[22]) for the perceptual loss
# --------------------------------------------------------------------------
VGG_CFG = [  # (Cin, Cout, maxpool_after) -- conv+ReLU layers up to relu index 22
    (3, 64, False), (64, 64, True),
    (64, 128, False), (128, 128, True),
    (128, 256, False), (256, 256, False), (256, 256, False), (256, 256, True),
    (256, 512, False), (512, 512, False),
]


def init_vgg_params(key):
    # TODO(synk): torchvision vgg19(pretrained=True) weights are not available
    # in-script; deterministic He-init stands in for them.
    params = []
    for (cin, cout, pool) in VGG_CFG:
        key, kw, kb = jax.random.split(key, 3)
        std = math.sqrt(2.0 / (9.0 * cin))
        w = jax.random.normal(kw, (3, 3, cin, cout), jnp.float32) * std
        bb = jax.random.normal(kb, (cout,), jnp.float32) * 0.01
        params.append((w, bb, pool))
    return params


def maxpool2x2(x):
    # TODO(synk): 2x2 max-pool kept in plain JAX; fusing it into the conv
    # epilogue would save one HBM round trip on the 4 pooled layers.
    N, H, W, C = x.shape
    return x.reshape(N, H // 2, 2, W // 2, 2, C).max(axis=(2, 4))


def vgg_features(x, params):
    for (w, bb, pool) in params:
        if w.shape[2] < 8:                  # first layer (Cin=3): im2col path
            x = conv3x3_relu_small_cin(x, w, bb)
        else:
            x = conv3x3_relu(x, w, bb)
        if pool:
            x = maxpool2x2(x)
    return x


def perceptual_loss(pred, gt, params, weights=(1.0,)):
    # one VGG pass over [pred; gt] so each layer's weights stay VMEM-resident
    both = jnp.concatenate([pred, gt], axis=0)
    feats = vgg_features(both, params)
    n = pred.shape[0]
    return weights[0] * _mean_sq_diff(feats[:n], feats[n:])


# --------------------------------------------------------------------------
# Mesh losses (tiny (B, 9, 9, 2) tensors)
# TODO(synk): mesh grid losses are scalar-scale work on a 9x9 grid; kept in
#             plain JAX instead of a dedicated Pallas kernel.
# --------------------------------------------------------------------------
def intra_grid_loss(pts):
    delta_x = pts[:, :, 0:GRID_W, 0] - pts[:, :, 1:GRID_W + 1, 0]
    delta_y = pts[:, 0:GRID_H, :, 1] - pts[:, 1:GRID_H + 1, :, 1]
    loss_x = jax.nn.relu(delta_x + MIN_W)
    loss_y = jax.nn.relu(delta_y + MIN_H)
    return jnp.mean(loss_x) + jnp.mean(loss_y)


def inter_grid_loss(mesh):
    w_edges = mesh[:, :, 0:GRID_W, :] - mesh[:, :, 1:GRID_W + 1, :]
    wa = w_edges[:, :, 0:GRID_W - 1, :]
    wb = w_edges[:, :, 1:GRID_W, :]
    cos_w = jnp.sum(wa * wb, 3) / (
        jnp.sqrt(jnp.sum(wa * wa, 3)) * jnp.sqrt(jnp.sum(wb * wb, 3)))
    delta_w_angle = 1.0 - cos_w
    h_edges = mesh[:, 0:GRID_H, :, :] - mesh[:, 1:GRID_H + 1, :, :]
    ha = h_edges[:, 0:GRID_H - 1, :, :]
    hb = h_edges[:, 1:GRID_H, :, :]
    cos_h = jnp.sum(ha * hb, 3) / (
        jnp.sqrt(jnp.sum(ha * ha, 3)) * jnp.sqrt(jnp.sum(hb * hb, 3)))
    delta_h_angle = 1.0 - cos_h
    return jnp.mean(delta_w_angle) + jnp.mean(delta_h_angle)


# --------------------------------------------------------------------------
# Total_loss.forward
# --------------------------------------------------------------------------
def total_loss(mesh_primary, warp_image_primary, warp_mask_primary, gt,
               super_image, super_gt_img, vgg_params,
               lam_appearance=1.0, lam_perception=1.0, lam_mask=1.0,
               lam_mesh=1.0):
    del warp_mask_primary, lam_perception, lam_mask  # unused in reference forward
    lam_ssim = 5e-6
    lam_primary_weight = 2.0
    lam_super_weight = 1.0

    mesh_loss = intra_grid_loss(mesh_primary) + inter_grid_loss(mesh_primary)

    # primary pair: fused L1 + Laplacian-L2 (one HBM pass)
    appearance_loss, grad_l = l1_and_grad_loss(warp_image_primary, gt)
    perception_loss = perceptual_loss(warp_image_primary * 255.0, gt * 255.0,
                                      vgg_params)

    # super pair: fused L1 + SSIM + Laplacian-L2 (one HBM pass)
    super_app, super_grad, super_ssim_mean = l1_ssim_grad_loss(super_image,
                                                               super_gt_img)
    super_ssim = 1.0 - super_ssim_mean
    super_img_loss = super_app * 1.0 + super_ssim * 0.2 + super_grad * 0.1

    primary_img_loss = (appearance_loss * lam_appearance +
                        perception_loss * lam_ssim +
                        grad_l * 0.1 + mesh_loss * lam_mesh)
    g_loss = (primary_img_loss * lam_primary_weight +
              super_img_loss * lam_super_weight)
    return (g_loss * 10.0,
            primary_img_loss * lam_primary_weight * 10.0,
            super_img_loss * lam_super_weight * 10.0)


if __name__ == "__main__":
    key = jax.random.PRNGKey(0)
    k_mesh, k_w, k_gt, k_s, k_sgt, k_vgg = jax.random.split(key, 6)

    B, H, W, C = 2, 16, 16, 3

    # regular mesh grid (x spacing 512/GRID_W, y spacing 384/GRID_H) + jitter
    xs = jnp.arange(GRID_W + 1, dtype=jnp.float32) * (512.0 / GRID_W)
    ys = jnp.arange(GRID_H + 1, dtype=jnp.float32) * (384.0 / GRID_H)
    base = jnp.stack(jnp.meshgrid(xs, ys, indexing="xy"), axis=-1)  # (GH+1,GW+1,2)
    mesh_primary = base[None] + 2.0 * jax.random.normal(
        k_mesh, (B, GRID_H + 1, GRID_W + 1, 2), jnp.float32)

    warp_image_primary = jax.random.uniform(k_w, (B, H, W, C), jnp.float32)
    gt = jax.random.uniform(k_gt, (B, H, W, C), jnp.float32)
    warp_mask_primary = jnp.ones((B, H, W, 1), jnp.float32)
    super_image = jax.random.uniform(k_s, (B, H, W, C), jnp.float32)
    super_gt_img = jax.random.uniform(k_sgt, (B, H, W, C), jnp.float32)

    vgg_params = init_vgg_params(k_vgg)

    out = total_loss(mesh_primary, warp_image_primary, warp_mask_primary, gt,
                     super_image, super_gt_img, vgg_params,
                     lam_appearance=1.0, lam_perception=1.0, lam_mask=1.0,
                     lam_mesh=1.0)
    jax.block_until_ready(out)
    print("KERNEL_OK")
</pallas_src>

<mosaic_0001>
module attributes {stable_mosaic.version = 11 : i64} {
  func.func @kernel(%arg0: i32, %arg1: memref<96x16xf32, #tpu.memory_space<vmem>>, %arg2: memref<96x16xf32, #tpu.memory_space<vmem>>, %arg3: memref<1x3xf32, #tpu.memory_space<smem>>, %arg4: memref<3xf32, #tpu.memory_space<smem>>) attributes {dimension_semantics = [#tpu.dimension_semantics<arbitrary>], iteration_bounds = array<i64: 1>, scalar_prefetch = 0 : i64, scratch_operands = 1 : i64, tpu.core_type = #tpu.core_type<tc>, window_params = [{transform_indices = @transform_0, window_bounds = array<i64: 96, 16>}, {transform_indices = @transform_1, window_bounds = array<i64: 96, 16>}, {transform_indices = @transform_2, window_bounds = array<i64: 1, 3>}]} {
    %c0_i32 = arith.constant 0 : i32
    %0 = arith.cmpi eq, %arg0, %c0_i32 : i32
    %1 = arith.extui %0 : i1 to i32
    %c0_i32_0 = arith.constant 0 : i32
    %2 = arith.cmpi ne, %1, %c0_i32_0 : i32
    scf.if %2 {
      %cst_31 = arith.constant 0.000000e+00 : f32
      %c0_32 = arith.constant 0 : index
      %85 = memref.load %arg4[%c0_32] : memref<3xf32, #tpu.memory_space<smem>>
      memref.store %cst_31, %arg4[%c0_32] : memref<3xf32, #tpu.memory_space<smem>>
      %cst_33 = arith.constant 0.000000e+00 : f32
      %c1_34 = arith.constant 1 : index
      %86 = memref.load %arg4[%c1_34] : memref<3xf32, #tpu.memory_space<smem>>
      memref.store %cst_33, %arg4[%c1_34] : memref<3xf32, #tpu.memory_space<smem>>
      %cst_35 = arith.constant 0.000000e+00 : f32
      %c2 = arith.constant 2 : index
      %87 = memref.load %arg4[%c2] : memref<3xf32, #tpu.memory_space<smem>>
      memref.store %cst_35, %arg4[%c2] : memref<3xf32, #tpu.memory_space<smem>>
    } else {
    }
    %c0 = arith.constant 0 : index
    %c0_1 = arith.constant 0 : index
    %3 = vector.load %arg1[%c0, %c0_1] : memref<96x16xf32, #tpu.memory_space<vmem>>, vector<96x16xf32>
    %c0_2 = arith.constant 0 : index
    %c0_3 = arith.constant 0 : index
    %4 = vector.load %arg2[%c0_2, %c0_3] : memref<96x16xf32, #tpu.memory_space<vmem>>, vector<96x16xf32>
    %5 = arith.subf %3, %4 : vector<96x16xf32>
    %c0_4 = arith.constant 0 : index
    %6 = memref.load %arg4[%c0_4] : memref<3xf32, #tpu.memory_space<smem>>
    %7 = math.absf %5 : vector<96x16xf32>
    %8 = vector.shape_cast %7 : vector<96x16xf32> to vector<1x96x16xf32>
    %cst = arith.constant dense<0.000000e+00> : vector<1xf32>
    %9 = vector.multi_reduction <add>, %8, %cst [1, 2] : vector<1x96x16xf32> to vector<1xf32>
    %10 = vector.shape_cast %9 : vector<1xf32> to vector<1x1x1xf32>
    %11 = vector.extract %10[0, 0, 0] : f32 from vector<1x1x1xf32>
    %12 = arith.addf %6, %11 : f32
    %c0_5 = arith.constant 0 : index
    %13 = memref.load %arg4[%c0_5] : memref<3xf32, #tpu.memory_space<smem>>
    memref.store %12, %arg4[%c0_5] : memref<3xf32, #tpu.memory_space<smem>>
    %14 = tpu.iota {dimensions = array<i32: 0>} : vector<96x16xi32>
    %15 = tpu.iota {dimensions = array<i32: 1>} : vector<96x16xi32>
    %c16_i32 = arith.constant 16 : i32
    %c0_i32_6 = arith.constant 0 : i32
    %16 = arith.cmpi eq, %c16_i32, %c0_i32_6 : i32
    %c1_i32 = arith.constant 1 : i32
    %17 = arith.select %16, %c1_i32, %c16_i32 : i32
    %18 = vector.broadcast %17 : i32 to vector<96x16xi32>
    %19 = arith.remsi %14, %18 : vector<96x16xi32>
    %c0_i32_7 = arith.constant 0 : i32
    %20 = vector.broadcast %c0_i32_7 : i32 to vector<96x16xi32>
    %21 = arith.cmpi ne, %19, %20 : vector<96x16xi32>
    %c0_i32_8 = arith.constant 0 : i32
    %22 = vector.broadcast %c0_i32_8 : i32 to vector<96x16xi32>
    %23 = arith.cmpi slt, %19, %22 : vector<96x16xi32>
    %c0_i32_9 = arith.constant 0 : i32
    %24 = arith.cmpi slt, %17, %c0_i32_9 : i32
    %25 = vector.broadcast %24 : i1 to vector<96x16xi1>
    %26 = vector.broadcast %25 : vector<96x16xi1> to vector<96x16xi1>
    %27 = arith.xori %23, %26 : vector<96x16xi1>
    %28 = arith.andi %27, %21 : vector<96x16xi1>
    %29 = vector.broadcast %17 : i32 to vector<96x16xi32>
    %30 = arith.addi %19, %29 : vector<96x16xi32>
    %31 = arith.select %28, %30, %19 : vector<96x16xi1>, vector<96x16xi32>
    %c0_i32_10 = arith.constant 0 : i32
    %32 = vector.broadcast %c0_i32_10 : i32 to vector<96x16xi32>
    %33 = arith.cmpi eq, %31, %32 : vector<96x16xi32>
    %c1_i32_11 = arith.constant 1 : i32
    %34 = tpu.dynamic_rotate %5 by %c1_i32_11 dim 0 : vector<96x16xf32>, i32 -> vector<96x16xf32>
    %cst_12 = arith.constant 0.000000e+00 : f32
    %35 = vector.broadcast %cst_12 : f32 to vector<96x16xf32>
    %36 = arith.select %33, %35, %34 : vector<96x16xi1>, vector<96x16xf32>
    %c16_i32_13 = arith.constant 16 : i32
    %c0_i32_14 = arith.constant 0 : i32
    %37 = arith.cmpi eq, %c16_i32_13, %c0_i32_14 : i32
    %c1_i32_15 = arith.constant 1 : i32
    %38 = arith.select %37, %c1_i32_15, %c16_i32_13 : i32
    %39 = vector.broadcast %38 : i32 to vector<96x16xi32>
    %40 = arith.remsi %14, %39 : vector<96x16xi32>
    %c0_i32_16 = arith.constant 0 : i32
    %41 = vector.broadcast %c0_i32_16 : i32 to vector<96x16xi32>
    %42 = arith.cmpi ne, %40, %41 : vector<96x16xi32>
    %c0_i32_17 = arith.constant 0 : i32
    %43 = vector.broadcast %c0_i32_17 : i32 to vector<96x16xi32>
    %44 = arith.cmpi slt, %40, %43 : vector<96x16xi32>
    %c0_i32_18 = arith.constant 0 : i32
    %45 = arith.cmpi slt, %38, %c0_i32_18 : i32
    %46 = vector.broadcast %45 : i1 to vector<96x16xi1>
    %47 = vector.broadcast %46 : vector<96x16xi1> to vector<96x16xi1>
    %48 = arith.xori %44, %47 : vector<96x16xi1>
    %49 = arith.andi %48, %42 : vector<96x16xi1>
    %50 = vector.broadcast %38 : i32 to vector<96x16xi32>
    %51 = arith.addi %40, %50 : vector<96x16xi32>
    %52 = arith.select %49, %51, %40 : vector<96x16xi1>, vector<96x16xi32>
    %c15_i32 = arith.constant 15 : i32
    %53 = vector.broadcast %c15_i32 : i32 to vector<96x16xi32>
    %54 = arith.cmpi eq, %52, %53 : vector<96x16xi32>
    %c95_i32 = arith.constant 95 : i32
    %55 = tpu.dynamic_rotate %5 by %c95_i32 dim 0 : vector<96x16xf32>, i32 -> vector<96x16xf32>
    %cst_19 = arith.constant 0.000000e+00 : f32
    %56 = vector.broadcast %cst_19 : f32 to vector<96x16xf32>
    %57 = arith.select %54, %56, %55 : vector<96x16xi1>, vector<96x16xf32>
    %c0_i32_20 = arith.constant 0 : i32
    %58 = vector.broadcast %c0_i32_20 : i32 to vector<96x16xi32>
    %59 = arith.cmpi eq, %15, %58 : vector<96x16xi32>
    %c1_i32_21 = arith.constant 1 : i32
    %60 = tpu.dynamic_rotate %5 by %c1_i32_21 dim 1 : vector<96x16xf32>, i32 -> vector<96x16xf32>
    %cst_22 = arith.constant 0.000000e+00 : f32
    %61 = vector.broadcast %cst_22 : f32 to vector<96x16xf32>
    %62 = arith.select %59, %61, %60 : vector<96x16xi1>, vector<96x16xf32>
    %c15_i32_23 = arith.constant 15 : i32
    %63 = vector.broadcast %c15_i32_23 : i32 to vector<96x16xi32>
    %64 = arith.cmpi eq, %15, %63 : vector<96x16xi32>
    %c15_i32_24 = arith.constant 15 : i32
    %65 = tpu.dynamic_rotate %5 by %c15_i32_24 dim 1 : vector<96x16xf32>, i32 -> vector<96x16xf32>
    %cst_25 = arith.constant 0.000000e+00 : f32
    %66 = vector.broadcast %cst_25 : f32 to vector<96x16xf32>
    %67 = arith.select %64, %66, %65 : vector<96x16xi1>, vector<96x16xf32>
    %68 = arith.addf %36, %57 : vector<96x16xf32>
    %69 = arith.addf %68, %62 : vector<96x16xf32>
    %70 = arith.addf %69, %67 : vector<96x16xf32>
    %cst_26 = arith.constant 4.000000e+00 : f32
    %71 = vector.broadcast %cst_26 : f32 to vector<96x16xf32>
    %72 = arith.mulf %71, %5 : vector<96x16xf32>
    %73 = arith.subf %70, %72 : vector<96x16xf32>
    %c1 = arith.constant 1 : index
    %74 = memref.load %arg4[%c1] : memref<3xf32, #tpu.memory_space<smem>>
    %75 = arith.mulf %73, %73 : vector<96x16xf32>
    %76 = vector.shape_cast %75 : vector<96x16xf32> to vector<1x96x16xf32>
    %cst_27 = arith.constant dense<0.000000e+00> : vector<1xf32>
    %77 = vector.multi_reduction <add>, %76, %cst_27 [1, 2] : vector<1x96x16xf32> to vector<1xf32>
    %78 = vector.shape_cast %77 : vector<1xf32> to vector<1x1x1xf32>
    %79 = vector.extract %78[0, 0, 0] : f32 from vector<1x1x1xf32>
    %80 = arith.addf %74, %79 : f32
    %c1_28 = arith.constant 1 : index
    %81 = memref.load %arg4[%c1_28] : memref<3xf32, #tpu.memory_space<smem>>
    memref.store %80, %arg4[%c1_28] : memref<3xf32, #tpu.memory_space<smem>>
    %c0_i32_29 = arith.constant 0 : i32
    %82 = arith.cmpi eq, %arg0, %c0_i32_29 : i32
    %83 = arith.extui %82 : i1 to i32
    %c0_i32_30 = arith.constant 0 : i32
    %84 = arith.cmpi ne, %83, %c0_i32_30 : i32
    scf.if %84 {
      %c0_31 = arith.constant 0 : index
      %85 = memref.load %arg4[%c0_31] : memref<3xf32, #tpu.memory_space<smem>>
      %c0_32 = arith.constant 0 : index
      %c0_33 = arith.constant 0 : index
      %86 = memref.load %arg3[%c0_32, %c0_33] : memref<1x3xf32, #tpu.memory_space<smem>>
      memref.store %85, %arg3[%c0_32, %c0_33] : memref<1x3xf32, #tpu.memory_space<smem>>
      %c1_34 = arith.constant 1 : index
      %87 = memref.load %arg4[%c1_34] : memref<3xf32, #tpu.memory_space<smem>>
      %c0_35 = arith.constant 0 : index
      %c1_36 = arith.constant 1 : index
      %88 = memref.load %arg3[%c0_35, %c1_36] : memref<1x3xf32, #tpu.memory_space<smem>>
      memref.store %87, %arg3[%c0_35, %c1_36] : memref<1x3xf32, #tpu.memory_space<smem>>
      %c2 = arith.constant 2 : index
      %89 = memref.load %arg4[%c2] : memref<3xf32, #tpu.memory_space<smem>>
      %c0_37 = arith.constant 0 : index
      %c2_38 = arith.constant 2 : index
      %90 = memref.load %arg3[%c0_37, %c2_38] : memref<1x3xf32, #tpu.memory_space<smem>>
      memref.store %89, %arg3[%c0_37, %c2_38] : memref<1x3xf32, #tpu.memory_space<smem>>
    } else {
    }
    return
  }
  func.func @transform_0(%arg0: i32) -> (i32, i32) {
    %c0_i32 = arith.constant 0 : i32
    %c0_i32_0 = arith.constant 0 : i32
    return %arg0, %c0_i32 : i32, i32
  }
  func.func @transform_1(%arg0: i32) -> (i32, i32) {
    %c0_i32 = arith.constant 0 : i32
    %c0_i32_0 = arith.constant 0 : i32
    return %arg0, %c0_i32 : i32, i32
  }
  func.func @transform_2(%arg0: i32) -> (i32, i32) {
    %c0_i32 = arith.constant 0 : i32
    %c0_i32_0 = arith.constant 0 : i32
    %c0_i32_1 = arith.constant 0 : i32
    return %c0_i32, %c0_i32_0 : i32, i32
  }
}

</mosaic_0001>

<llo_original>
// kernel: tpu_custom_call.1
$region0: #{tpu_custom_call.1}
  #allocation0 [shape = 'u32[]', space=smem, size = 0x4, offset = 0x4, fixed_abs, tag = 'smem constant byte address 0x4 - core index']
  #allocation1 [shape = 'u32[144,128]{1,0:T(1,128)}', space=vmem, size = 0x12000, scoped, tag = 'internal scratch']
  #allocation2 [shape = 'f32[3]{0:T(128)}', space=smem, size = 0x200, scoped, tag = 'scratch operand']
  %s0 = inlined_call_operand.vmem [shape: f32[96,16], index: 0, kind: input, shape index: {}]
  %s1 = inlined_call_operand.vmem [shape: f32[96,16], index: 1, kind: input, shape index: {}]
  %s2 = inlined_call_operand.hbm [shape: f32[1,3], index: 2, kind: output, shape index: {}]
  %s3 = sld [smem:[#allocation0]]
  $region26: #{tpu_custom_call.1} parent=0
    _
  %s5 = ssub.s32 1, %s3
  %s6 = scalar_select 0, %s5, %s3
  $region1: #{tpu_custom_call.1} parent=0
    #allocation3 [shape = 'u8[512]{0}', space=smem, size = 0x200, scoped, tag = 'output window, operand 0, single buffered']
    #allocation4 [shape = 's32[1]{0}', space=sflag, size = 0x4, scoped, tag = 'scoped memory for tpu_custom_call.1']
    %7 = vsyncpa [#allocation4], 0
    // Predicated region
    $region2: #{tpu_custom_call.1} parent=1 // pred_check
      _
    $region3: #{tpu_custom_call.1} parent=1 // pred_check_branch
      %9 = sbr.rel (0) target = $region5
    $region4: #{tpu_custom_call.1} parent=1 // pred_region
      _
    $region5: #{tpu_custom_call.1} parent=1 // pred_fallthru
      _
    // Predicated region
    $region6: #{tpu_custom_call.1} parent=1 // pred_check
      _
    $region7: #{tpu_custom_call.1} parent=1 // pred_check_branch
      %11 = sbr.rel (0) target = $region9
    $region8: #{tpu_custom_call.1} parent=1 // pred_region
      _
    $region9: #{tpu_custom_call.1} parent=1 // pred_fallthru
      _
    %p12 = scmp.eq.s32.totalorder 0, 0
    // Predicated region
    $region10: #{tpu_custom_call.1} parent=1 // pred_check
      %p13 = pneg %p12
    $region11: #{tpu_custom_call.1} parent=1 // pred_check_branch
      %15 = sbr.rel (%p13) target = $region13
    $region12: #{tpu_custom_call.1} parent=1 // pred_region
      %s16 = scalar_lea.smem [#allocation2], 0
      %17 = sst [smem:[%s16]] 0.0
      %s18 = scalar_lea.smem [#allocation2], 1
      %19 = sst [smem:[%s18]] 0.0
      %s20 = scalar_lea.smem [#allocation2], 2
      %21 = sst [smem:[%s20]] 0.0
    $region13: #{tpu_custom_call.1} parent=1 // pred_fallthru
      _
    %v22 = vld [vmem:[%s0] sm:$0xff]
    %v23 = vld [vmem:[%s0 + $0x8] sm:$0xff]
    %v24 = vld [vmem:[%s0 + $0x10] sm:$0xff]
    %v25 = vld [vmem:[%s0 + $0x18] sm:$0xff]
    %v26 = vld [vmem:[%s0 + $0x20] sm:$0xff]
    %v27 = vld [vmem:[%s0 + $0x28] sm:$0xff]
    %v28 = vld [vmem:[%s0 + $0x30] sm:$0xff]
    %v29 = vld [vmem:[%s0 + $0x38] sm:$0xff]
    %v30 = vld [vmem:[%s0 + $0x40] sm:$0xff]
    %v31 = vld [vmem:[%s0 + $0x48] sm:$0xff]
    %v32 = vld [vmem:[%s0 + $0x50] sm:$0xff]
    %v33 = vld [vmem:[%s0 + $0x58] sm:$0xff]
    %v34 = vld [vmem:[%s1] sm:$0xff]
    %v35 = vld [vmem:[%s1 + $0x8] sm:$0xff]
    %v36 = vld [vmem:[%s1 + $0x10] sm:$0xff]
    %v37 = vld [vmem:[%s1 + $0x18] sm:$0xff]
    %v38 = vld [vmem:[%s1 + $0x20] sm:$0xff]
    %v39 = vld [vmem:[%s1 + $0x28] sm:$0xff]
    %v40 = vld [vmem:[%s1 + $0x30] sm:$0xff]
    %v41 = vld [vmem:[%s1 + $0x38] sm:$0xff]
    %v42 = vld [vmem:[%s1 + $0x40] sm:$0xff]
    %v43 = vld [vmem:[%s1 + $0x48] sm:$0xff]
    %v44 = vld [vmem:[%s1 + $0x50] sm:$0xff]
    %v45 = vld [vmem:[%s1 + $0x58] sm:$0xff]
    %v46 = vsub.f32 %v22, %v34
    %v47 = vsub.f32 %v23, %v35
    %v48 = vsub.f32 %v24, %v36
    %v49 = vsub.f32 %v25, %v37
    %v50 = vsub.f32 %v26, %v38
    %v51 = vsub.f32 %v27, %v39
    %v52 = vsub.f32 %v28, %v40
    %v53 = vsub.f32 %v29, %v41
    %v54 = vsub.f32 %v30, %v42
    %v55 = vsub.f32 %v31, %v43
    %v56 = vsub.f32 %v32, %v44
    %v57 = vsub.f32 %v33, %v45
    %s58 = sld [smem:[#allocation2]]
    %v59 = vand.u32 2147483647, %v46
    %v60 = vand.u32 2147483647, %v47
    %v61 = vand.u32 2147483647, %v48
    %v62 = vand.u32 2147483647, %v49
    %v63 = vand.u32 2147483647, %v50
    %v64 = vand.u32 2147483647, %v51
    %v65 = vand.u32 2147483647, %v52
    %v66 = vand.u32 2147483647, %v53
    %v67 = vand.u32 2147483647, %v54
    %v68 = vand.u32 2147483647, %v55
    %v69 = vand.u32 2147483647, %v56
    %v70 = vand.u32 2147483647, %v57
    %vm71 = vcmask 130048
    %v72 = vsel %vm71, %v59, 0.0
    %v73 = vsel %vm71, %v60, 0.0
    %v74 = vadd.f32 %v72, %v73
    %v75 = vsel %vm71, %v61, 0.0
    %v76 = vadd.f32 %v74, %v75
    %v77 = vsel %vm71, %v62, 0.0
    %v78 = vadd.f32 %v76, %v77
    %v79 = vsel %vm71, %v63, 0.0
    %v80 = vadd.f32 %v78, %v79
    %v81 = vsel %vm71, %v64, 0.0
    %v82 = vadd.f32 %v80, %v81
    %v83 = vsel %vm71, %v65, 0.0
    %v84 = vadd.f32 %v82, %v83
    %v85 = vsel %vm71, %v66, 0.0
    %v86 = vadd.f32 %v84, %v85
    %v87 = vsel %vm71, %v67, 0.0
    %v88 = vadd.f32 %v86, %v87
    %v89 = vsel %vm71, %v68, 0.0
    %v90 = vadd.f32 %v88, %v89
    %v91 = vsel %vm71, %v69, 0.0
    %v92 = vadd.f32 %v90, %v91
    %v93 = vsel %vm71, %v70, 0.0
    %v94 = vadd.f32 %v92, %v93
    %95 = vadd.xlane.f32.xlu0 %v94
    %v96 = vpop.xlane.xlu0 %95
    %v97 = vrot.slane %v96, 4
    %v98 = vadd.f32 %v96, %v97
    %v99 = vrot.slane %v98, 2
    %v100 = vadd.f32 %v98, %v99
    %v101 = vrot.slane %v100, 1
    %v102 = vadd.f32 %v100, %v101
    %s103 = vtos %v102
    %s104 = sadd.f32 %s58, %s103
    %s105 = scalar_lea.smem [#allocation2], 0
    %106 = sst [smem:[%s105]] %s104
    %v107 = vlaneseq
    %v108 = vshrl.u32 %v107, 7
    %v109 = vadd.s32 %v108, 8
    %v110 = vadd.s32 %v108, 16
    %v111 = vadd.s32 %v108, 24
    %v112 = vadd.s32 %v108, 32
    %v113 = vadd.s32 %v108, 40
    %v114 = vadd.s32 %v108, 48
    %v115 = vadd.s32 %v108, 56
    %v116 = vadd.s32 %v108, 64
    %v117 = vadd.s32 %v108, 72
    %v118 = vadd.s32 %v108, 80
    %v119 = vadd.s32 %v108, 88
    %v120 = vlaneseq
    %v121 = vand.u32 %v120, 127
    %vm122 = vcmp.lt.s32.totalorder %v108, 0
    %v123 = vsub.s32 0, %v108
    %v124 = vsel %vm122, %v123, %v108
    %v125 = vshrl.u32 %v124, 4
    %v126 = vand.u32 %v124, 15
    %v127 = vsub.s32 0, %v126
    %v128 = vsel %vm122, %v127, %v126
    %vm129 = vcmp.lt.s32.totalorder %v109, 0
    %v130 = vsub.s32 0, %v109
    %v131 = vsel %vm129, %v130, %v109
    %v132 = vshrl.u32 %v131, 4
    %v133 = vand.u32 %v131, 15
    %v134 = vsub.s32 0, %v133
    %v135 = vsel %vm129, %v134, %v133
    %vm136 = vcmp.lt.s32.totalorder %v110, 0
    %v137 = vsub.s32 0, %v110
    %v138 = vsel %vm136, %v137, %v110
    %v139 = vshrl.u32 %v138, 4
    %v140 = vand.u32 %v138, 15
    %v141 = vsub.s32 0, %v140
    %v142 = vsel %vm136, %v141, %v140
    %vm143 = vcmp.lt.s32.totalorder %v111, 0
    %v144 = vsub.s32 0, %v111
    %v145 = vsel %vm143, %v144, %v111
    %v146 = vshrl.u32 %v145, 4
    %v147 = vand.u32 %v145, 15
    %v148 = vsub.s32 0, %v147
    %v149 = vsel %vm143, %v148, %v147
    %vm150 = vcmp.lt.s32.totalorder %v112, 0
    %v151 = vsub.s32 0, %v112
    %v152 = vsel %vm150, %v151, %v112
    %v153 = vshrl.u32 %v152, 4
    %v154 = vand.u32 %v152, 15
    %v155 = vsub.s32 0, %v154
    %v156 = vsel %vm150, %v155, %v154
    %vm157 = vcmp.lt.s32.totalorder %v113, 0
    %v158 = vsub.s32 0, %v113
    %v159 = vsel %vm157, %v158, %v113
    %v160 = vshrl.u32 %v159, 4
    %v161 = vand.u32 %v159, 15
    %v162 = vsub.s32 0, %v161
    %v163 = vsel %vm157, %v162, %v161
    %vm164 = vcmp.lt.s32.totalorder %v114, 0
    %v165 = vsub.s32 0, %v114
    %v166 = vsel %vm164, %v165, %v114
    %v167 = vshrl.u32 %v166, 4
    %v168 = vand.u32 %v166, 15
    %v169 = vsub.s32 0, %v168
    %v170 = vsel %vm164, %v169, %v168
    %vm171 = vcmp.lt.s32.totalorder %v115, 0
    %v172 = vsub.s32 0, %v115
    %v173 = vsel %vm171, %v172, %v115
    %v174 = vshrl.u32 %v173, 4
    %v175 = vand.u32 %v173, 15
    %v176 = vsub.s32 0, %v175
    %v177 = vsel %vm171, %v176, %v175
    %vm178 = vcmp.lt.s32.totalorder %v116, 0
    %v179 = vsub.s32 0, %v116
    %v180 = vsel %vm178, %v179, %v116
    %v181 = vshrl.u32 %v180, 4
    %v182 = vand.u32 %v180, 15
    %v183 = vsub.s32 0, %v182
    %v184 = vsel %vm178, %v183, %v182
    %vm185 = vcmp.lt.s32.totalorder %v117, 0
    %v186 = vsub.s32 0, %v117
    %v187 = vsel %vm185, %v186, %v117
    %v188 = vshrl.u32 %v187, 4
    %v189 = vand.u32 %v187, 15
    %v190 = vsub.s32 0, %v189
    %v191 = vsel %vm185, %v190, %v189
    %vm192 = vcmp.lt.s32.totalorder %v118, 0
    %v193 = vsub.s32 0, %v118
    %v194 = vsel %vm192, %v193, %v118
    %v195 = vshrl.u32 %v194, 4
    %v196 = vand.u32 %v194, 15
    %v197 = vsub.s32 0, %v196
    %v198 = vsel %vm192, %v197, %v196
    %vm199 = vcmp.lt.s32.totalorder %v119, 0
    %v200 = vsub.s32 0, %v119
    %v201 = vsel %vm199, %v200, %v119
    %v202 = vshrl.u32 %v201, 4
    %v203 = vand.u32 %v201, 15
    %v204 = vsub.s32 0, %v203
    %v205 = vsel %vm199, %v204, %v203
    %vm206 = vcmp.ne.s32.totalorder %v128, 0
    %vm207 = vcmp.ne.s32.totalorder %v135, 0
    %vm208 = vcmp.ne.s32.totalorder %v142, 0
    %vm209 = vcmp.ne.s32.totalorder %v149, 0
    %vm210 = vcmp.ne.s32.totalorder %v156, 0
    %vm211 = vcmp.ne.s32.totalorder %v163, 0
    %vm212 = vcmp.ne.s32.totalorder %v170, 0
    %vm213 = vcmp.ne.s32.totalorder %v177, 0
    %vm214 = vcmp.ne.s32.totalorder %v184, 0
    %vm215 = vcmp.ne.s32.totalorder %v191, 0
    %vm216 = vcmp.ne.s32.totalorder %v198, 0
    %vm217 = vcmp.ne.s32.totalorder %v205, 0
    %vm218 = vcmp.lt.s32.totalorder %v128, 0
    %vm219 = vcmp.lt.s32.totalorder %v135, 0
    %vm220 = vcmp.lt.s32.totalorder %v142, 0
    %vm221 = vcmp.lt.s32.totalorder %v149, 0
    %vm222 = vcmp.lt.s32.totalorder %v156, 0
    %vm223 = vcmp.lt.s32.totalorder %v163, 0
    %vm224 = vcmp.lt.s32.totalorder %v170, 0
    %vm225 = vcmp.lt.s32.totalorder %v177, 0
    %vm226 = vcmp.lt.s32.totalorder %v184, 0
    %vm227 = vcmp.lt.s32.totalorder %v191, 0
    %vm228 = vcmp.lt.s32.totalorder %v198, 0
    %vm229 = vcmp.lt.s32.totalorder %v205, 0
    %vm230 = vmand %vm218, %vm206
    %vm231 = vmand %vm219, %vm207
    %vm232 = vmand %vm220, %vm208
    %vm233 = vmand %vm221, %vm209
    %vm234 = vmand %vm222, %vm210
    %vm235 = vmand %vm223, %vm211
    %vm236 = vmand %vm224, %vm212
    %vm237 = vmand %vm225, %vm213
    %vm238 = vmand %vm226, %vm214
    %vm239 = vmand %vm227, %vm215
    %vm240 = vmand %vm228, %vm216
    %vm241 = vmand %vm229, %vm217
    %v242 = vadd.s32 %v128, 16
    %v243 = vadd.s32 %v135, 16
    %v244 = vadd.s32 %v142, 16
    %v245 = vadd.s32 %v149, 16
    %v246 = vadd.s32 %v156, 16
    %v247 = vadd.s32 %v163, 16
    %v248 = vadd.s32 %v170, 16
    %v249 = vadd.s32 %v177, 16
    %v250 = vadd.s32 %v184, 16
    %v251 = vadd.s32 %v191, 16
    %v252 = vadd.s32 %v198, 16
    %v253 = vadd.s32 %v205, 16
    %v254 = vsel %vm230, %v242, %v128
    %v255 = vsel %vm231, %v243, %v135
    %v256 = vsel %vm232, %v244, %v142
    %v257 = vsel %vm233, %v245, %v149
    %v258 = vsel %vm234, %v246, %v156
    %v259 = vsel %vm235, %v247, %v163
    %v260 = vsel %vm236, %v248, %v170
    %v261 = vsel %vm237, %v249, %v177
    %v262 = vsel %vm238, %v250, %v184
    %v263 = vsel %vm239, %v251, %v191
    %v264 = vsel %vm240, %v252, %v198
    %v265 = vsel %vm241, %v253, %v205
    %vm266 = vcmp.eq.s32.totalorder %v254, 0
    %vm267 = vcmp.eq.s32.totalorder %v255, 0
    %vm268 = vcmp.eq.s32.totalorder %v256, 0
    %vm269 = vcmp.eq.s32.totalorder %v257, 0
    %vm270 = vcmp.eq.s32.totalorder %v258, 0
    %vm271 = vcmp.eq.s32.totalorder %v259, 0
    %vm272 = vcmp.eq.s32.totalorder %v260, 0
    %vm273 = vcmp.eq.s32.totalorder %v261, 0
    %vm274 = vcmp.eq.s32.totalorder %v262, 0
    %vm275 = vcmp.eq.s32.totalorder %v263, 0
    %vm276 = vcmp.eq.s32.totalorder %v264, 0
    %vm277 = vcmp.eq.s32.totalorder %v265, 0
    %v278 = vrot.slane %v46, 7
    %v279 = vrot.slane %v47, 7
    %v280 = vrot.slane %v48, 7
    %v281 = vrot.slane %v49, 7
    %v282 = vrot.slane %v50, 7
    %v283 = vrot.slane %v51, 7
    %v284 = vrot.slane %v52, 7
    %v285 = vrot.slane %v53, 7
    %v286 = vrot.slane %v54, 7
    %v287 = vrot.slane %v55, 7
    %v288 = vrot.slane %v56, 7
    %v289 = vrot.slane %v57, 7
    %vm290 = vcmp.lt.s32.totalorder %v108, 1
    %v291 = vsel %vm290, %v288, %v289
    %v292 = vsel %vm290, %v287, %v288
    %v293 = vsel %vm290, %v286, %v287
    %v294 = vsel %vm290, %v285, %v286
    %v295 = vsel %vm290, %v284, %v285
    %v296 = vsel %vm290, %v283, %v284
    %v297 = vsel %vm290, %v282, %v283
    %v298 = vsel %vm290, %v281, %v282
    %v299 = vsel %vm290, %v280, %v281
    %v300 = vsel %vm290, %v279, %v280
    %v301 = vsel %vm290, %v278, %v279
    %v302 = vsel %vm290, %v289, %v278
    %v303 = vsel %vm266, 0.0, %v302
    %v304 = vsel %vm267, 0.0, %v301
    %v305 = vsel %vm268, 0.0, %v300
    %v306 = vsel %vm269, 0.0, %v299
    %v307 = vsel %vm270, 0.0, %v298
    %v308 = vsel %vm271, 0.0, %v297
    %v309 = vsel %vm272, 0.0, %v296
    %v310 = vsel %vm273, 0.0, %v295
    %v311 = vsel %vm274, 0.0, %v294
    %v312 = vsel %vm275, 0.0, %v293
    %v313 = vsel %vm276, 0.0, %v292
    %v314 = vsel %vm277, 0.0, %v291
    %vm315 = vcmp.eq.s32.totalorder %v254, 15
    %vm316 = vcmp.eq.s32.totalorder %v255, 15
    %vm317 = vcmp.eq.s32.totalorder %v256, 15
    %vm318 = vcmp.eq.s32.totalorder %v257, 15
    %vm319 = vcmp.eq.s32.totalorder %v258, 15
    %vm320 = vcmp.eq.s32.totalorder %v259, 15
    %vm321 = vcmp.eq.s32.totalorder %v260, 15
    %vm322 = vcmp.eq.s32.totalorder %v261, 15
    %vm323 = vcmp.eq.s32.totalorder %v262, 15
    %vm324 = vcmp.eq.s32.totalorder %v263, 15
    %vm325 = vcmp.eq.s32.totalorder %v264, 15
    %vm326 = vcmp.eq.s32.totalorder %v265, 15
    %v327 = vrot.slane %v46, 1
    %v328 = vrot.slane %v47, 1
    %v329 = vrot.slane %v48, 1
    %v330 = vrot.slane %v49, 1
    %v331 = vrot.slane %v50, 1
    %v332 = vrot.slane %v51, 1
    %v333 = vrot.slane %v52, 1
    %v334 = vrot.slane %v53, 1
    %v335 = vrot.slane %v54, 1
    %v336 = vrot.slane %v55, 1
    %v337 = vrot.slane %v56, 1
    %v338 = vrot.slane %v57, 1
    %vm339 = vcmp.lt.s32.totalorder %v108, 7
    %v340 = vsel %vm339, %v337, %v338
    %v341 = vsel %vm339, %v336, %v337
    %v342 = vsel %vm339, %v335, %v336
    %v343 = vsel %vm339, %v334, %v335
    %v344 = vsel %vm339, %v333, %v334
    %v345 = vsel %vm339, %v332, %v333
    %v346 = vsel %vm339, %v331, %v332
    %v347 = vsel %vm339, %v330, %v331
    %v348 = vsel %vm339, %v329, %v330
    %v349 = vsel %vm339, %v328, %v329
    %v350 = vsel %vm339, %v327, %v328
    %v351 = vsel %vm339, %v338, %v327
    %v352 = vsel %vm315, 0.0, %v350
    %v353 = vsel %vm316, 0.0, %v349
    %v354 = vsel %vm317, 0.0, %v348
    %v355 = vsel %vm318, 0.0, %v347
    %v356 = vsel %vm319, 0.0, %v346
    %v357 = vsel %vm320, 0.0, %v345
    %v358 = vsel %vm321, 0.0, %v344
    %v359 = vsel %vm322, 0.0, %v343
    %v360 = vsel %vm323, 0.0, %v342
    %v361 = vsel %vm324, 0.0, %v341
    %v362 = vsel %vm325, 0.0, %v340
    %v363 = vsel %vm326, 0.0, %v351
    %vm364 = vcmp.eq.s32.totalorder %v121, 0
    %vm365 = vcmask 1047680
    %366 = vrot.lane.b32.xlu0 %v46, 16
    %v367 = vpop.permute.xlu0 %366
    %v368 = vsel %vm365, %v367, %v46
    %369 = vrot.lane.b32.xlu0 %v47, 16
    %v370 = vpop.permute.xlu0 %369
    %v371 = vsel %vm365, %v370, %v47
    %372 = vrot.lane.b32.xlu0 %v48, 16
    %v373 = vpop.permute.xlu0 %372
    %v374 = vsel %vm365, %v373, %v48
    %375 = vrot.lane.b32.xlu0 %v49, 16
    %v376 = vpop.permute.xlu0 %375
    %v377 = vsel %vm365, %v376, %v49
    %378 = vrot.lane.b32.xlu0 %v50, 16
    %v379 = vpop.permute.xlu0 %378
    %v380 = vsel %vm365, %v379, %v50
    %381 = vrot.lane.b32.xlu0 %v51, 16
    %v382 = vpop.permute.xlu0 %381
    %v383 = vsel %vm365, %v382, %v51
    %384 = vrot.lane.b32.xlu0 %v52, 16
    %v385 = vpop.permute.xlu0 %384
    %v386 = vsel %vm365, %v385, %v52
    %387 = vrot.lane.b32.xlu0 %v53, 16
    %v388 = vpop.permute.xlu0 %387
    %v389 = vsel %vm365, %v388, %v53
    %390 = vrot.lane.b32.xlu0 %v54, 16
    %v391 = vpop.permute.xlu0 %390
    %v392 = vsel %vm365, %v391, %v54
    %393 = vrot.lane.b32.xlu0 %v55, 16
    %v394 = vpop.permute.xlu0 %393
    %v395 = vsel %vm365, %v394, %v55
    %396 = vrot.lane.b32.xlu0 %v56, 16
    %v397 = vpop.permute.xlu0 %396
    %v398 = vsel %vm365, %v397, %v56
    %399 = vrot.lane.b32.xlu0 %v57, 16
    %v400 = vpop.permute.xlu0 %399
    %v401 = vsel %vm365, %v400, %v57
    %402 = vrot.lane.b32.xlu0 %v368, 16
    %v403 = vpop.permute.xlu0 %402
    %404 = vrot.lane.b32.xlu0 %v371, 16
    %v405 = vpop.permute.xlu0 %404
    %406 = vrot.lane.b32.xlu0 %v374, 16
    %v407 = vpop.permute.xlu0 %406
    %408 = vrot.lane.b32.xlu0 %v377, 16
    %v409 = vpop.permute.xlu0 %408
    %410 = vrot.lane.b32.xlu0 %v380, 16
    %v411 = vpop.permute.xlu0 %410
    %412 = vrot.lane.b32.xlu0 %v383, 16
    %v413 = vpop.permute.xlu0 %412
    %414 = vrot.lane.b32.xlu0 %v386, 16
    %v415 = vpop.permute.xlu0 %414
    %416 = vrot.lane.b32.xlu0 %v389, 16
    %v417 = vpop.permute.xlu0 %416
    %418 = vrot.lane.b32.xlu0 %v392, 16
    %v419 = vpop.permute.xlu0 %418
    %420 = vrot.lane.b32.xlu0 %v395, 16
    %v421 = vpop.permute.xlu0 %420
    %422 = vrot.lane.b32.xlu0 %v398, 16
    %v423 = vpop.permute.xlu0 %422
    %424 = vrot.lane.b32.xlu0 %v401, 16
    %v425 = vpop.permute.xlu0 %424
    %v426 = vsel %vm365, %v403, %v46
    %v427 = vsel %vm365, %v405, %v47
    %v428 = vsel %vm365, %v407, %v48
    %v429 = vsel %vm365, %v409, %v49
    %v430 = vsel %vm365, %v411, %v50
    %v431 = vsel %vm365, %v413, %v51
    %v432 = vsel %vm365, %v415, %v52
    %v433 = vsel %vm365, %v417, %v53
    %v434 = vsel %vm365, %v419, %v54
    %v435 = vsel %vm365, %v421, %v55
    %v436 = vsel %vm365, %v423, %v56
    %v437 = vsel %vm365, %v425, %v57
    %450 = vrot.lane.b32.xlu0 %v426, 113
    %v451 = vpop.permute.xlu0 %450
    %452 = vrot.lane.b32.xlu0 %v427, 113
    %v453 = vpop.permute.xlu0 %452
    %454 = vrot.lane.b32.xlu0 %v428, 113
    %v455 = vpop.permute.xlu0 %454
    %456 = vrot.lane.b32.xlu0 %v429, 113
    %v457 = vpop.permute.xlu0 %456
    %458 = vrot.lane.b32.xlu0 %v430, 113
    %v459 = vpop.permute.xlu0 %458
    %460 = vrot.lane.b32.xlu0 %v431, 113
    %v461 = vpop.permute.xlu0 %460
    %462 = vrot.lane.b32.xlu0 %v432, 113
    %v463 = vpop.permute.xlu0 %462
    %464 = vrot.lane.b32.xlu0 %v433, 113
    %v465 = vpop.permute.xlu0 %464
    %466 = vrot.lane.b32.xlu0 %v434, 113
    %v467 = vpop.permute.xlu0 %466
    %468 = vrot.lane.b32.xlu0 %v435, 113
    %v469 = vpop.permute.xlu0 %468
    %470 = vrot.lane.b32.xlu0 %v436, 113
    %v471 = vpop.permute.xlu0 %470
    %472 = vrot.lane.b32.xlu0 %v437, 113
    %v473 = vpop.permute.xlu0 %472
    %v486 = vsel %vm364, 0.0, %v451
    %v487 = vsel %vm364, 0.0, %v453
    %v488 = vsel %vm364, 0.0, %v455
    %v489 = vsel %vm364, 0.0, %v457
    %v490 = vsel %vm364, 0.0, %v459
    %v491 = vsel %vm364, 0.0, %v461
    %v492 = vsel %vm364, 0.0, %v463
    %v493 = vsel %vm364, 0.0, %v465
    %v494 = vsel %vm364, 0.0, %v467
    %v495 = vsel %vm364, 0.0, %v469
    %v496 = vsel %vm364, 0.0, %v471
    %v497 = vsel %vm364, 0.0, %v473
    %vm498 = vcmp.eq.s32.totalorder %v121, 15
    %499 = vrot.lane.b32.xlu0 %v426, 127
    %v500 = vpop.permute.xlu0 %499
    %501 = vrot.lane.b32.xlu0 %v427, 127
    %v502 = vpop.permute.xlu0 %501
    %503 = vrot.lane.b32.xlu0 %v428, 127
    %v504 = vpop.permute.xlu0 %503
    %505 = vrot.lane.b32.xlu0 %v429, 127
    %v506 = vpop.permute.xlu0 %505
    %507 = vrot.lane.b32.xlu0 %v430, 127
    %v508 = vpop.permute.xlu0 %507
    %509 = vrot.lane.b32.xlu0 %v431, 127
    %v510 = vpop.permute.xlu0 %509
    %511 = vrot.lane.b32.xlu0 %v432, 127
    %v512 = vpop.permute.xlu0 %511
    %513 = vrot.lane.b32.xlu0 %v433, 127
    %v514 = vpop.permute.xlu0 %513
    %515 = vrot.lane.b32.xlu0 %v434, 127
    %v516 = vpop.permute.xlu0 %515
    %517 = vrot.lane.b32.xlu0 %v435, 127
    %v518 = vpop.permute.xlu0 %517
    %519 = vrot.lane.b32.xlu0 %v436, 127
    %v520 = vpop.permute.xlu0 %519
    %521 = vrot.lane.b32.xlu0 %v437, 127
    %v522 = vpop.permute.xlu0 %521
    %v535 = vsel %vm498, 0.0, %v500
    %v536 = vsel %vm498, 0.0, %v502
    %v537 = vsel %vm498, 0.0, %v504
    %v538 = vsel %vm498, 0.0, %v506
    %v539 = vsel %vm498, 0.0, %v508
    %v540 = vsel %vm498, 0.0, %v510
    %v541 = vsel %vm498, 0.0, %v512
    %v542 = vsel %vm498, 0.0, %v514
    %v543 = vsel %vm498, 0.0, %v516
    %v544 = vsel %vm498, 0.0, %v518
    %v545 = vsel %vm498, 0.0, %v520
    %v546 = vsel %vm498, 0.0, %v522
    %v547 = vadd.f32 %v303, %v352
    %v548 = vadd.f32 %v304, %v353
    %v549 = vadd.f32 %v305, %v354
    %v550 = vadd.f32 %v306, %v355
    %v551 = vadd.f32 %v307, %v356
    %v552 = vadd.f32 %v308, %v357
    %v553 = vadd.f32 %v309, %v358
    %v554 = vadd.f32 %v310, %v359
    %v555 = vadd.f32 %v311, %v360
    %v556 = vadd.f32 %v312, %v361
    %v557 = vadd.f32 %v313, %v362
    %v558 = vadd.f32 %v314, %v363
    %v559 = vadd.f32 %v547, %v486
    %v560 = vadd.f32 %v548, %v487
    %v561 = vadd.f32 %v549, %v488
    %v562 = vadd.f32 %v550, %v489
    %v563 = vadd.f32 %v551, %v490
    %v564 = vadd.f32 %v552, %v491
    %v565 = vadd.f32 %v553, %v492
    %v566 = vadd.f32 %v554, %v493
    %v567 = vadd.f32 %v555, %v494
    %v568 = vadd.f32 %v556, %v495
    %v569 = vadd.f32 %v557, %v496
    %v570 = vadd.f32 %v558, %v497
    %v571 = vadd.f32 %v559, %v535
    %v572 = vadd.f32 %v560, %v536
    %v573 = vadd.f32 %v561, %v537
    %v574 = vadd.f32 %v562, %v538
    %v575 = vadd.f32 %v563, %v539
    %v576 = vadd.f32 %v564, %v540
    %v577 = vadd.f32 %v565, %v541
    %v578 = vadd.f32 %v566, %v542
    %v579 = vadd.f32 %v567, %v543
    %v580 = vadd.f32 %v568, %v544
    %v581 = vadd.f32 %v569, %v545
    %v582 = vadd.f32 %v570, %v546
    %v583 = vmul.f32 %v46, 4.0
    %v584 = vmul.f32 %v47, 4.0
    %v585 = vmul.f32 %v48, 4.0
    %v586 = vmul.f32 %v49, 4.0
    %v587 = vmul.f32 %v50, 4.0
    %v588 = vmul.f32 %v51, 4.0
    %v589 = vmul.f32 %v52, 4.0
    %v590 = vmul.f32 %v53, 4.0
    %v591 = vmul.f32 %v54, 4.0
    %v592 = vmul.f32 %v55, 4.0
    %v593 = vmul.f32 %v56, 4.0
    %v594 = vmul.f32 %v57, 4.0
    %v595 = vsub.f32 %v571, %v583
    %v596 = vsub.f32 %v572, %v584
    %v597 = vsub.f32 %v573, %v585
    %v598 = vsub.f32 %v574, %v586
    %v599 = vsub.f32 %v575, %v587
    %v600 = vsub.f32 %v576, %v588
    %v601 = vsub.f32 %v577, %v589
    %v602 = vsub.f32 %v578, %v590
    %v603 = vsub.f32 %v579, %v591
    %v604 = vsub.f32 %v580, %v592
    %v605 = vsub.f32 %v581, %v593
    %v606 = vsub.f32 %v582, %v594
    %s607 = sld [smem:[#allocation2 + $0x1]]
    %v608 = vmul.f32 %v595, %v595
    %v609 = vmul.f32 %v596, %v596
    %v610 = vmul.f32 %v597, %v597
    %v611 = vmul.f32 %v598, %v598
    %v612 = vmul.f32 %v599, %v599
    %v613 = vmul.f32 %v600, %v600
    %v614 = vmul.f32 %v601, %v601
    %v615 = vmul.f32 %v602, %v602
    %v616 = vmul.f32 %v603, %v603
    %v617 = vmul.f32 %v604, %v604
    %v618 = vmul.f32 %v605, %v605
    %v619 = vmul.f32 %v606, %v606
    %v620 = vsel %vm71, %v608, 0.0
    %v621 = vsel %vm71, %v609, 0.0
    %v622 = vadd.f32 %v620, %v621
    %v623 = vsel %vm71, %v610, 0.0
    %v624 = vadd.f32 %v622, %v623
    %v625 = vsel %vm71, %v611, 0.0
    %v626 = vadd.f32 %v624, %v625
    %v627 = vsel %vm71, %v612, 0.0
    %v628 = vadd.f32 %v626, %v627
    %v629 = vsel %vm71, %v613, 0.0
    %v630 = vadd.f32 %v628, %v629
    %v631 = vsel %vm71, %v614, 0.0
    %v632 = vadd.f32 %v630, %v631
    %v633 = vsel %vm71, %v615, 0.0
    %v634 = vadd.f32 %v632, %v633
    %v635 = vsel %vm71, %v616, 0.0
    %v636 = vadd.f32 %v634, %v635
    %v637 = vsel %vm71, %v617, 0.0
    %v638 = vadd.f32 %v636, %v637
    %v639 = vsel %vm71, %v618, 0.0
    %v640 = vadd.f32 %v638, %v639
    %v641 = vsel %vm71, %v619, 0.0
    %v642 = vadd.f32 %v640, %v641
    %643 = vadd.xlane.f32.xlu0 %v642
    %v644 = vpop.xlane.xlu0 %643
    %v645 = vrot.slane %v644, 4
    %v646 = vadd.f32 %v644, %v645
    %v647 = vrot.slane %v646, 2
    %v648 = vadd.f32 %v646, %v647
    %v649 = vrot.slane %v648, 1
    %v650 = vadd.f32 %v648, %v649
    %s651 = vtos %v650
    %s652 = sadd.f32 %s607, %s651
    %s653 = scalar_lea.smem [#allocation2], 1
    %654 = sst [smem:[%s653]] %s652
    // Predicated region
    $region14: #{tpu_custom_call.1} parent=1 // pred_check
      %p655 = pneg %p12
    $region15: #{tpu_custom_call.1} parent=1 // pred_check_branch
      %657 = sbr.rel (%p655) target = $region17
    $region16: #{tpu_custom_call.1} parent=1 // pred_region
      %s658 = sld [smem:[#allocation2]]
      %s659 = scalar_lea.smem [#allocation3], 0
      %660 = sst [smem:[%s659]] %s658
      %s661 = sld [smem:[#allocation2 + $0x1]]
      %s662 = scalar_lea.smem [#allocation3], 1
      %663 = sst [smem:[%s662]] %s661
      %s664 = sld [smem:[#allocation2 + $0x2]]
      %s665 = scalar_lea.smem [#allocation3], 2
      %666 = sst [smem:[%s665]] %s664
    $region17: #{tpu_custom_call.1} parent=1 // pred_fallthru
      _
    // Predicated region
    $region18: #{tpu_custom_call.1} parent=1 // pred_check
      _
    $region19: #{tpu_custom_call.1} parent=1 // pred_check_branch
      %668 = sbr.rel (0) target = $region21
    $region20: #{tpu_custom_call.1} parent=1 // pred_region
      %s670 = ssub.s32 16, 16
      %671 = vsyncadd [#allocation4], %s670
      %674 = dma.smem_to_hbm [#allocation3], 16, %s2, [#allocation4]
    $region21: #{tpu_custom_call.1} parent=1 // pred_fallthru
      _
    // Predicated region
    $region22: #{tpu_custom_call.1} parent=1 // pred_check
      _
    $region23: #{tpu_custom_call.1} parent=1 // pred_check_branch
      %676 = sbr.rel (0) target = $region25
    $region24: #{tpu_custom_call.1} parent=1 // pred_region
      %677 = dma.done [#allocation4], 16
    $region25: #{tpu_custom_call.1} parent=1 // pred_fallthru
      _
    %678 = sfence
    %679 = vsyncpa [#allocation4], 1

</llo_original>
